<compile_context>
chip_gen: v7x
topology: tpu7x:2x2x1
jax: 0.10.0
libtpu: 0.0.40
codegen_flags: <defaults>
</compile_context>

<pallas_src>
import functools

import jax
import jax.numpy as jnp
from jax.experimental import pallas as pl
from jax.experimental.pallas import tpu as pltpu

_LANE = 128
_NEG_BIG = -1e30     # acts as -inf for padded class logits (exp underflows to 0)
_MAX_BLOCK_B = 1024  # per-row VMEM footprint is tiny; 1024 rows amortize overhead


def _round_up(x, m):
    return (x + m - 1) // m * m


def _cdiv(a, b):
    return (a + b - 1) // b


def _num_tensorcores():
    # v7x has 2 TensorCores per chip sharing the grid via the "parallel" axis;
    # v5e/v6e have a single TC, where the grid is just a serial loop.
    try:
        kind = jax.devices()[0].device_kind.lower()
    except Exception:  # pragma: no cover - defensive
        return 1
    return 2 if "v7" in kind else 1


def _choose_block_b(B):
    tiles = max(_num_tensorcores(), _cdiv(B, _MAX_BLOCK_B))
    if tiles <= 1:
        return B                       # one tile == whole batch (always legal)
    block_b = _round_up(_cdiv(B, tiles), 8)
    if block_b >= B:
        return B
    return block_b


def _vmem_limit_bytes(block_b, d, hp, cp):
    f32, bf16 = 4, 2
    budget = (
        2 * block_b * d * f32           # x tile, f32, double-buffered
        + d * hp * bf16                 # fc1 weight (single-buffered)
        + 8 * hp * f32                  # fc1 bias (sublane-padded)
        + hp * cp * bf16                # fc3 weight (single-buffered)
        + 8 * cp * f32                  # fc3 bias
        + 2 * block_b * cp * f32        # output tile, double-buffered
        + block_b * (d * bf16 + hp * f32 + hp * bf16 + 2 * cp * f32)  # intermediates
    )
    # generous headroom; floor 16 MiB, cap at v7x per-TC physical VMEM (64 MiB)
    return int(min(max(4 * budget, 16 * 1024 * 1024), 64 * 1024 * 1024))


def _mlp_softmax_kernel(x_ref, w1_ref, b1_ref, w3_ref, b3_ref, o_ref):
    # In-kernel f32 -> bf16 cast of the activation stream (hides under the MXU).
    x = x_ref[...].astype(jnp.bfloat16)
    # fc1: (TB, D) bf16 @ (D, Hp) bf16 -> (TB, Hp) f32 accumulation on the MXU.
    h = jnp.dot(x, w1_ref[...], preferred_element_type=jnp.float32)
    h = jnp.maximum(h + b1_ref[...], 0.0)            # bias + ReLU in f32 (VPU)
    # dropout(eval) == identity
    # fc3: (TB, Hp) bf16 @ (Hp, Cp) bf16 -> (TB, Cp) f32 accumulation.
    logits = jnp.dot(h.astype(w3_ref.dtype), w3_ref[...],
                     preferred_element_type=jnp.float32)
    logits = logits + b3_ref[...]                    # padded lanes carry -1e30
    # numerically-stable softmax over the lane-dense, padded class axis
    m = jnp.max(logits, axis=1, keepdims=True)
    e = jnp.exp(logits - m)                          # padded lanes -> exactly 0
    denom = jnp.sum(e, axis=1, keepdims=True)
    o_ref[...] = (e / denom).astype(o_ref.dtype)     # exact divide; rows sum to 1


def prepare_params(w1, b1, w3, b3):
    """One-time weight prep: lane-pad H and C to 128, cast weights to bf16.

    Weights are stored transposed vs. PyTorch nn.Linear: w1 (D, H), w3 (H, C).
    Padding is exact: relu(0 + 0) = 0 hidden cols feed zero rows of w3; padded
    class lanes carry a -1e30 bias so exp underflows to exactly 0.
    """
    D, H = w1.shape
    C = w3.shape[1]
    Hp = _round_up(H, _LANE)
    Cp = _round_up(C, _LANE)

    w1p = jnp.zeros((D, Hp), jnp.bfloat16).at[:, :H].set(w1.astype(jnp.bfloat16))
    b1p = jnp.zeros((1, Hp), jnp.float32).at[:, :H].set(
        b1.reshape(1, H).astype(jnp.float32))
    w3p = jnp.zeros((Hp, Cp), jnp.bfloat16).at[:H, :C].set(w3.astype(jnp.bfloat16))
    b3p = jnp.full((1, Cp), _NEG_BIG, jnp.float32).at[:, :C].set(
        b3.reshape(1, C).astype(jnp.float32))
    return {"w1": w1p, "b1": b1p, "w3": w3p, "b3": b3p, "num_classes": C}


@functools.partial(jax.jit, static_argnames=("block_b", "num_classes"))
def _forward(x, w1p, b1p, w3p, b3p, *, block_b, num_classes):
    B, D = x.shape
    Hp = w1p.shape[1]
    Cp = w3p.shape[1]

    grid = (_cdiv(B, block_b),)        # partial last block is masked by Pallas
    single = pl.Buffered(1)            # grid-invariant operands: no double-buffering

    out = pl.pallas_call(
        _mlp_softmax_kernel,
        out_shape=jax.ShapeDtypeStruct((B, Cp), jnp.float32),
        grid=grid,
        in_specs=[
            pl.BlockSpec((block_b, D), lambda i: (i, 0)),                    # x tile
            pl.BlockSpec((D, Hp), lambda i: (0, 0), pipeline_mode=single),   # fc1 W
            pl.BlockSpec((1, Hp), lambda i: (0, 0), pipeline_mode=single),   # fc1 b
            pl.BlockSpec((Hp, Cp), lambda i: (0, 0), pipeline_mode=single),  # fc3 W
            pl.BlockSpec((1, Cp), lambda i: (0, 0), pipeline_mode=single),   # fc3 b
        ],
        out_specs=pl.BlockSpec((block_b, Cp), lambda i: (i, 0)),
        compiler_params=pltpu.CompilerParams(
            dimension_semantics=("parallel",),
            vmem_limit_bytes=_vmem_limit_bytes(block_b, D, Hp, Cp),
        ),
    )(x, w1p, b1p, w3p, b3p)

    return out[:, :num_classes]        # drop class-lane padding (fused in the jit)


def multi_class_network_forward(x, params):
    """softmax(relu(x @ w1 + b1) @ w3 + b3, axis=1) -> (B, C) float32."""
    block_b = _choose_block_b(x.shape[0])
    return _forward(x, params["w1"], params["b1"], params["w3"], params["b3"],
                    block_b=block_b, num_classes=params["num_classes"])


def _reference(x, w1, b1, w3, b3):
    # Mirrors the kernel's bf16-operand / f32-accumulation numerics.
    h = jnp.dot(x.astype(jnp.bfloat16), w1.astype(jnp.bfloat16),
                preferred_element_type=jnp.float32) + b1
    h = jnp.maximum(h, 0.0)
    logits = jnp.dot(h.astype(jnp.bfloat16), w3.astype(jnp.bfloat16),
                     preferred_element_type=jnp.float32) + b3
    return jax.nn.softmax(logits, axis=1)


if __name__ == "__main__":
    # Module hyper-params: input_size=16, hidden_size=32, num_classes=10,
    # dropout_rate=0.5 (eval -> identity).  Batch chosen so the single-TC path
    # runs one full-batch tile and the v7x path splits it evenly across 2 TCs.
    B, D, H, C = 200, 16, 32, 10

    key = jax.random.PRNGKey(0)
    kx, k1w, k1b, k3w, k3b = jax.random.split(key, 5)

    x = jax.random.normal(kx, (B, D), dtype=jnp.float32)
    w1 = jax.random.normal(k1w, (D, H), dtype=jnp.float32) * 0.1
    b1 = jax.random.normal(k1b, (H,), dtype=jnp.float32) * 0.1
    w3 = jax.random.normal(k3w, (H, C), dtype=jnp.float32) * 0.1
    b3 = jax.random.normal(k3b, (C,), dtype=jnp.float32) * 0.1

    params = prepare_params(w1, b1, w3, b3)          # one-time weight prep
    out = multi_class_network_forward(x, params)
    out = jax.block_until_ready(out)

    ref = _reference(x, w1, b1, w3, b3)
    assert out.shape == (B, C)
    # bf16 MXU operands -> slightly looser tolerance than pure f32
    assert jnp.allclose(out, ref, atol=2e-3, rtol=2e-3), \
        float(jnp.max(jnp.abs(out - ref)))
    # exact divide -> rows normalize to 1 up to f32 rounding
    assert jnp.allclose(jnp.sum(out, axis=1), 1.0, atol=1e-4)

    print("KERNEL_OK")
</pallas_src>

<mosaic_0001>
module attributes {stable_mosaic.version = 11 : i64} {
  func.func @_mlp_softmax_kernel(%arg0: i32, %arg1: memref<200x16xf32, #tpu.memory_space<vmem>>, %arg2: memref<16x128xbf16, #tpu.memory_space<vmem>>, %arg3: memref<1x128xf32, #tpu.memory_space<vmem>>, %arg4: memref<128x128xbf16, #tpu.memory_space<vmem>>, %arg5: memref<1x128xf32, #tpu.memory_space<vmem>>, %arg6: memref<200x128xf32, #tpu.memory_space<vmem>>) attributes {dimension_semantics = [#tpu.dimension_semantics<parallel>], iteration_bounds = array<i64: 1>, scalar_prefetch = 0 : i64, scratch_operands = 0 : i64, tpu.core_type = #tpu.core_type<tc>, window_params = [{transform_indices = @transform_0, window_bounds = array<i64: 200, 16>}, {pipeline_mode = #tpu.pipeline_mode<synchronous>, transform_indices = @transform_1, window_bounds = array<i64: 16, 128>}, {pipeline_mode = #tpu.pipeline_mode<synchronous>, transform_indices = @transform_2, window_bounds = array<i64: 1, 128>}, {pipeline_mode = #tpu.pipeline_mode<synchronous>, transform_indices = @transform_3, window_bounds = array<i64: 128, 128>}, {pipeline_mode = #tpu.pipeline_mode<synchronous>, transform_indices = @transform_4, window_bounds = array<i64: 1, 128>}, {transform_indices = @transform_5, window_bounds = array<i64: 200, 128>}]} {
    %c0 = arith.constant 0 : index
    %c0_0 = arith.constant 0 : index
    %0 = vector.load %arg1[%c0, %c0_0] : memref<200x16xf32, #tpu.memory_space<vmem>>, vector<200x16xf32>
    %1 = arith.truncf %0 : vector<200x16xf32> to vector<200x16xbf16>
    %c0_1 = arith.constant 0 : index
    %c0_2 = arith.constant 0 : index
    %2 = vector.load %arg2[%c0_1, %c0_2] : memref<16x128xbf16, #tpu.memory_space<vmem>>, vector<16x128xbf16>
    %cst = arith.constant dense<0.000000e+00> : vector<200x128xf32>
    %3 = tpu.matmul %1, %2, %cst {dimension_numbers = #tpu.dot_dimension_numbers<[1], [0], [0], [1], [0, 0, 1, 1], [], []>} : vector<200x16xbf16>, vector<16x128xbf16>, vector<200x128xf32> -> vector<200x128xf32>
    %c0_3 = arith.constant 0 : index
    %c0_4 = arith.constant 0 : index
    %4 = vector.load %arg3[%c0_3, %c0_4] : memref<1x128xf32, #tpu.memory_space<vmem>>, vector<1x128xf32>
    %5 = vector.broadcast %4 : vector<1x128xf32> to vector<200x128xf32>
    %6 = arith.addf %3, %5 : vector<200x128xf32>
    %cst_5 = arith.constant 0.000000e+00 : f32
    %7 = vector.broadcast %cst_5 : f32 to vector<200x128xf32>
    %8 = arith.maximumf %6, %7 : vector<200x128xf32>
    %9 = arith.truncf %8 : vector<200x128xf32> to vector<200x128xbf16>
    %c0_6 = arith.constant 0 : index
    %c0_7 = arith.constant 0 : index
    %10 = vector.load %arg4[%c0_6, %c0_7] : memref<128x128xbf16, #tpu.memory_space<vmem>>, vector<128x128xbf16>
    %cst_8 = arith.constant dense<0.000000e+00> : vector<200x128xf32>
    %11 = tpu.matmul %9, %10, %cst_8 {dimension_numbers = #tpu.dot_dimension_numbers<[1], [0], [0], [1], [0, 0, 1, 1], [], []>} : vector<200x128xbf16>, vector<128x128xbf16>, vector<200x128xf32> -> vector<200x128xf32>
    %c0_9 = arith.constant 0 : index
    %c0_10 = arith.constant 0 : index
    %12 = vector.load %arg5[%c0_9, %c0_10] : memref<1x128xf32, #tpu.memory_space<vmem>>, vector<1x128xf32>
    %13 = vector.broadcast %12 : vector<1x128xf32> to vector<200x128xf32>
    %14 = arith.addf %11, %13 : vector<200x128xf32>
    %cst_11 = arith.constant dense<0xFF800000> : vector<200xf32>
    %15 = vector.multi_reduction <maximumf>, %14, %cst_11 [1] : vector<200x128xf32> to vector<200xf32>
    %16 = vector.shape_cast %15 : vector<200xf32> to vector<200x1xf32>
    %17 = vector.broadcast %16 : vector<200x1xf32> to vector<200x128xf32>
    %18 = arith.subf %14, %17 : vector<200x128xf32>
    %19 = math.exp %18 : vector<200x128xf32>
    %cst_12 = arith.constant dense<0.000000e+00> : vector<200xf32>
    %20 = vector.multi_reduction <add>, %19, %cst_12 [1] : vector<200x128xf32> to vector<200xf32>
    %21 = vector.shape_cast %20 : vector<200xf32> to vector<200x1xf32>
    %22 = vector.broadcast %21 : vector<200x1xf32> to vector<200x128xf32>
    %23 = arith.divf %19, %22 : vector<200x128xf32>
    %c0_13 = arith.constant 0 : index
    %c0_14 = arith.constant 0 : index
    %24 = vector.load %arg6[%c0_13, %c0_14] : memref<200x128xf32, #tpu.memory_space<vmem>>, vector<200x128xf32>
    tpu.vector_store %arg6[%c0_13, %c0_14], %23 {strides = array<i32>} : memref<200x128xf32, #tpu.memory_space<vmem>>, vector<200x128xf32>,
    return
  }
  func.func @transform_0(%arg0: i32) -> (i32, i32) {
    %c0_i32 = arith.constant 0 : i32
    %c0_i32_0 = arith.constant 0 : i32
    return %arg0, %c0_i32 : i32, i32
  }
  func.func @transform_1(%arg0: i32) -> (i32, i32) {
    %c0_i32 = arith.constant 0 : i32
    %c0_i32_0 = arith.constant 0 : i32
    %c0_i32_1 = arith.constant 0 : i32
    return %c0_i32, %c0_i32_0 : i32, i32
  }
  func.func @transform_2(%arg0: i32) -> (i32, i32) {
    %c0_i32 = arith.constant 0 : i32
    %c0_i32_0 = arith.constant 0 : i32
    %c0_i32_1 = arith.constant 0 : i32
    return %c0_i32, %c0_i32_0 : i32, i32
  }
  func.func @transform_3(%arg0: i32) -> (i32, i32) {
    %c0_i32 = arith.constant 0 : i32
    %c0_i32_0 = arith.constant 0 : i32
    %c0_i32_1 = arith.constant 0 : i32
    return %c0_i32, %c0_i32_0 : i32, i32
  }
  func.func @transform_4(%arg0: i32) -> (i32, i32) {
    %c0_i32 = arith.constant 0 : i32
    %c0_i32_0 = arith.constant 0 : i32
    %c0_i32_1 = arith.constant 0 : i32
    return %c0_i32, %c0_i32_0 : i32, i32
  }
  func.func @transform_5(%arg0: i32) -> (i32, i32) {
    %c0_i32 = arith.constant 0 : i32
    %c0_i32_0 = arith.constant 0 : i32
    return %arg0, %c0_i32 : i32, i32
  }
}

</mosaic_0001>

<llo_original>
// kernel: _forward.1
$region0: #{_forward.1}
  #allocation0 [shape = 'u32[]', space=smem, size = 0x4, offset = 0x4, fixed_abs, tag = 'smem constant byte address 0x4 - core index']
  #allocation1 [shape = 'u32[144,128]{1,0:T(1,128)}', space=vmem, size = 0x12000, scoped, tag = 'internal scratch']
  %s0 = inlined_call_operand.vmem [shape: f32[200,16], index: 0, kind: input, shape index: {}]
  %s1 = inlined_call_operand.vmem [shape: bf16[16,128], index: 1, kind: input, shape index: {}]
  %s2 = inlined_call_operand.vmem [shape: f32[1,128], index: 2, kind: input, shape index: {}]
  %s3 = inlined_call_operand.vmem [shape: bf16[128,128], index: 3, kind: input, shape index: {}]
  %s4 = inlined_call_operand.vmem [shape: f32[1,128], index: 4, kind: input, shape index: {}]
  %s5 = inlined_call_operand.vmem [shape: f32[200,128], index: 5, kind: output, shape index: {}]
  %s6 = sld [smem:[#allocation0]]
  $region30: #{_forward.1} parent=0
    _
  %s8 = ssub.s32 1, %s6
  %s9 = scalar_select 0, %s8, %s6
  // Predicated region
  $region2: #{_forward.1} parent=0 // pred_check
    _
  $region3: #{_forward.1} parent=0 // pred_check_branch
    %11 = sbr.rel (0) target = $region5
  $region4: #{_forward.1} parent=0 // pred_region
    _
  $region5: #{_forward.1} parent=0 // pred_fallthru
    _
  // Predicated region
  $region6: #{_forward.1} parent=0 // pred_check
    _
  $region7: #{_forward.1} parent=0 // pred_check_branch
    %13 = sbr.rel (0) target = $region9
  $region8: #{_forward.1} parent=0 // pred_region
    _
  $region9: #{_forward.1} parent=0 // pred_fallthru
    _
  // Predicated region
  $region10: #{_forward.1} parent=0 // pred_check
    _
  $region11: #{_forward.1} parent=0 // pred_check_branch
    %15 = sbr.rel (0) target = $region13
  $region12: #{_forward.1} parent=0 // pred_region
    _
  $region13: #{_forward.1} parent=0 // pred_fallthru
    _
  // Predicated region
  $region14: #{_forward.1} parent=0 // pred_check
    _
  $region15: #{_forward.1} parent=0 // pred_check_branch
    %17 = sbr.rel (0) target = $region17
  $region16: #{_forward.1} parent=0 // pred_region
    _
  $region17: #{_forward.1} parent=0 // pred_fallthru
    _
  // Predicated region
  $region18: #{_forward.1} parent=0 // pred_check
    _
  $region19: #{_forward.1} parent=0 // pred_check_branch
    %19 = sbr.rel (0) target = $region21
  $region20: #{_forward.1} parent=0 // pred_region
    _
  $region21: #{_forward.1} parent=0 // pred_fallthru
    _
  %v21 = vld [vmem:[%s0] sm:$0xff]
  %v22 = vld [vmem:[%s0 + $0x8] sm:$0xff]
  %v23 = vld [vmem:[%s0 + $0x10] sm:$0xff]
  %v24 = vld [vmem:[%s0 + $0x18] sm:$0xff]
  %v25 = vld [vmem:[%s0 + $0x20] sm:$0xff]
  %v26 = vld [vmem:[%s0 + $0x28] sm:$0xff]
  %v27 = vld [vmem:[%s0 + $0x30] sm:$0xff]
  %v28 = vld [vmem:[%s0 + $0x38] sm:$0xff]
  %v29 = vld [vmem:[%s0 + $0x40] sm:$0xff]
  %v30 = vld [vmem:[%s0 + $0x48] sm:$0xff]
  %v31 = vld [vmem:[%s0 + $0x50] sm:$0xff]
  %v32 = vld [vmem:[%s0 + $0x58] sm:$0xff]
  %v33 = vld [vmem:[%s0 + $0x60] sm:$0xff]
  %v34 = vld [vmem:[%s0 + $0x68] sm:$0xff]
  %v35 = vld [vmem:[%s0 + $0x70] sm:$0xff]
  %v36 = vld [vmem:[%s0 + $0x78] sm:$0xff]
  %v37 = vld [vmem:[%s0 + $0x80] sm:$0xff]
  %v38 = vld [vmem:[%s0 + $0x88] sm:$0xff]
  %v39 = vld [vmem:[%s0 + $0x90] sm:$0xff]
  %v40 = vld [vmem:[%s0 + $0x98] sm:$0xff]
  %v41 = vld [vmem:[%s0 + $0xa0] sm:$0xff]
  %v42 = vld [vmem:[%s0 + $0xa8] sm:$0xff]
  %v43 = vld [vmem:[%s0 + $0xb0] sm:$0xff]
  %v44 = vld [vmem:[%s0 + $0xb8] sm:$0xff]
  %v45 = vld [vmem:[%s0 + $0xc0] sm:$0xff]
  %v46 = vpack.c.bf16 %v22, %v21
  %v47 = vpack.c.bf16 %v24, %v23
  %v48 = vpack.c.bf16 %v26, %v25
  %v49 = vpack.c.bf16 %v28, %v27
  %v50 = vpack.c.bf16 %v30, %v29
  %v51 = vpack.c.bf16 %v32, %v31
  %v52 = vpack.c.bf16 %v34, %v33
  %v53 = vpack.c.bf16 %v36, %v35
  %v54 = vpack.c.bf16 %v38, %v37
  %v55 = vpack.c.bf16 %v40, %v39
  %v56 = vpack.c.bf16 %v42, %v41
  %v57 = vpack.c.bf16 %v44, %v43
  %v58 = vpack.c.bf16 %v45, %v45
  %v59 = vld [vmem:[%s1] sm:$0xf]
  %v60 = vld [vmem:[%s1 + $0x4] sm:$0xf]
  %v61 = vld [vmem:[%s2] sm:$0x1]
  %v63 = vlaneseq
  %v64 = vshrl.u32 %v63, 7
  %v65 = vsub.s32 0, %v64
  %v66 = vrot.slane %v61, %v65
  %v70 = vunpack.c.l.b16 %v59
  %v71 = vunpack.c.l.b16 %v60
  %v72 = vpack.c.b16 %v71, %v70
  %vm74 = vcmask 130048
  %v76 = vsel %vm74, %v46, 0
  %v79 = vsel %vm74, %v47, 0
  %v82 = vsel %vm74, %v48, 0
  %v85 = vsel %vm74, %v49, 0
  %v88 = vsel %vm74, %v50, 0
  %v91 = vsel %vm74, %v51, 0
  %v94 = vsel %vm74, %v52, 0
  %v97 = vsel %vm74, %v53, 0
  %v100 = vsel %vm74, %v54, 0
  %v103 = vsel %vm74, %v55, 0
  %v106 = vsel %vm74, %v56, 0
  %v109 = vsel %vm74, %v57, 0
  %v112 = vsel %vm74, %v58, 0
  %114 = vmatprep.subr.bf16.mxu0 0
  %115 = vmatpush1.bf16.msra.mxu0 %v72
  %116 = vmatprep.subr.bf16.mxu0 0
  %117 = vmatpush1.bf16.msra.mxu0 0
  %118 = vmatprep.subr.bf16.mxu0 0
  %119 = vmatpush1.bf16.msra.mxu0 0
  %120 = vmatprep.subr.bf16.mxu0 0
  %121 = vmatpush1.bf16.msra.mxu0 0
  %122 = vmatprep.subr.bf16.mxu0 0
  %123 = vmatpush1.bf16.msra.mxu0 0
  %124 = vmatprep.subr.bf16.mxu0 0
  %125 = vmatpush1.bf16.msra.mxu0 0
  %126 = vmatprep.subr.bf16.mxu0 0
  %127 = vmatpush1.bf16.msra.mxu0 0
  %128 = vmatprep.subr.bf16.mxu0 0
  %129 = vmatpush1.bf16.msra.mxu0 0
  %130 = vmatprep.subr.bf16.mxu0 0
  %131 = vmatpush1.bf16.msra.mxu0 0
  %132 = vmatprep.subr.bf16.mxu0 0
  %133 = vmatpush1.bf16.msra.mxu0 0
  %134 = vmatprep.subr.bf16.mxu0 0
  %135 = vmatpush1.bf16.msra.mxu0 0
  %136 = vmatprep.subr.bf16.mxu0 0
  %137 = vmatpush1.bf16.msra.mxu0 0
  %138 = vmatprep.subr.bf16.mxu0 0
  %139 = vmatpush1.bf16.msra.mxu0 0
  %140 = vmatprep.subr.bf16.mxu0 0
  %141 = vmatpush1.bf16.msra.mxu0 0
  %142 = vmatprep.subr.bf16.mxu0 0
  %143 = vmatpush1.bf16.msra.mxu0 0
  %144 = vmatprep.subr.bf16.mxu0 0
  %145 = vmatpush1.bf16.msra.mxu0 0
  %146 = vmatprep.mubr.bf16.mxu0 0
  %147 = vmatmul.mubr.bf16.gmra.mrb[0].mxu0 %v76
  %v148 = vpop.f32.mrb[0].mxu0
  %v149 = vadd.f32 %v66, %v148
  %v150 = vpop.f32.mrb[0].mxu0
  %v151 = vpop.f32.mrb[0].mxu0
  %v152 = vadd.f32 %v66, %v151
  %v153 = vpop.f32.mrb[0].mxu0
  %154 = vmatprep.mubr.bf16.mxu0 0
  %155 = vmatmul.mubr.bf16.gmra.mrb[0].mxu0 %v79
  %v156 = vpop.f32.mrb[0].mxu0
  %v157 = vadd.f32 %v66, %v156
  %v158 = vpop.f32.mrb[0].mxu0
  %v159 = vpop.f32.mrb[0].mxu0
  %v160 = vadd.f32 %v66, %v159
  %v161 = vpop.f32.mrb[0].mxu0
  %162 = vmatprep.mubr.bf16.mxu0 0
  %163 = vmatmul.mubr.bf16.gmra.mrb[0].mxu0 %v82
  %v164 = vpop.f32.mrb[0].mxu0
  %v165 = vadd.f32 %v66, %v164
  %v166 = vpop.f32.mrb[0].mxu0
  %v167 = vpop.f32.mrb[0].mxu0
  %v168 = vadd.f32 %v66, %v167
  %v169 = vpop.f32.mrb[0].mxu0
  %170 = vmatprep.mubr.bf16.mxu0 0
  %171 = vmatmul.mubr.bf16.gmra.mrb[0].mxu0 %v85
  %v172 = vpop.f32.mrb[0].mxu0
  %v173 = vadd.f32 %v66, %v172
  %v174 = vpop.f32.mrb[0].mxu0
  %v175 = vpop.f32.mrb[0].mxu0
  %v176 = vadd.f32 %v66, %v175
  %v177 = vpop.f32.mrb[0].mxu0
  %178 = vmatprep.mubr.bf16.mxu0 0
  %179 = vmatmul.mubr.bf16.gmra.mrb[0].mxu0 %v88
  %v180 = vpop.f32.mrb[0].mxu0
  %v181 = vadd.f32 %v66, %v180
  %v182 = vpop.f32.mrb[0].mxu0
  %v183 = vpop.f32.mrb[0].mxu0
  %v184 = vadd.f32 %v66, %v183
  %v185 = vpop.f32.mrb[0].mxu0
  %186 = vmatprep.mubr.bf16.mxu0 0
  %187 = vmatmul.mubr.bf16.gmra.mrb[0].mxu0 %v91
  %v188 = vpop.f32.mrb[0].mxu0
  %v189 = vadd.f32 %v66, %v188
  %v190 = vpop.f32.mrb[0].mxu0
  %v191 = vpop.f32.mrb[0].mxu0
  %v192 = vadd.f32 %v66, %v191
  %v193 = vpop.f32.mrb[0].mxu0
  %194 = vmatprep.mubr.bf16.mxu0 0
  %195 = vmatmul.mubr.bf16.gmra.mrb[0].mxu0 %v94
  %v196 = vpop.f32.mrb[0].mxu0
  %v197 = vadd.f32 %v66, %v196
  %v198 = vpop.f32.mrb[0].mxu0
  %v199 = vpop.f32.mrb[0].mxu0
  %v200 = vadd.f32 %v66, %v199
  %v201 = vpop.f32.mrb[0].mxu0
  %202 = vmatprep.mubr.bf16.mxu0 0
  %203 = vmatmul.mubr.bf16.gmra.mrb[0].mxu0 %v97
  %v204 = vpop.f32.mrb[0].mxu0
  %v205 = vadd.f32 %v66, %v204
  %v206 = vpop.f32.mrb[0].mxu0
  %v207 = vpop.f32.mrb[0].mxu0
  %v208 = vadd.f32 %v66, %v207
  %v209 = vpop.f32.mrb[0].mxu0
  %210 = vmatprep.mubr.bf16.mxu0 0
  %211 = vmatmul.mubr.bf16.gmra.mrb[0].mxu0 %v100
  %v212 = vpop.f32.mrb[0].mxu0
  %v213 = vadd.f32 %v66, %v212
  %v214 = vpop.f32.mrb[0].mxu0
  %v215 = vpop.f32.mrb[0].mxu0
  %v216 = vadd.f32 %v66, %v215
  %v217 = vpop.f32.mrb[0].mxu0
  %218 = vmatprep.mubr.bf16.mxu0 0
  %219 = vmatmul.mubr.bf16.gmra.mrb[0].mxu0 %v103
  %v220 = vpop.f32.mrb[0].mxu0
  %v221 = vadd.f32 %v66, %v220
  %v222 = vpop.f32.mrb[0].mxu0
  %v223 = vpop.f32.mrb[0].mxu0
  %v224 = vadd.f32 %v66, %v223
  %v225 = vpop.f32.mrb[0].mxu0
  %226 = vmatprep.mubr.bf16.mxu0 0
  %227 = vmatmul.mubr.bf16.gmra.mrb[0].mxu0 %v106
  %v228 = vpop.f32.mrb[0].mxu0
  %v229 = vadd.f32 %v66, %v228
  %v230 = vpop.f32.mrb[0].mxu0
  %v231 = vpop.f32.mrb[0].mxu0
  %v232 = vadd.f32 %v66, %v231
  %v233 = vpop.f32.mrb[0].mxu0
  %234 = vmatprep.mubr.bf16.mxu0 0
  %235 = vmatmul.mubr.bf16.gmra.mrb[0].mxu0 %v109
  %v236 = vpop.f32.mrb[0].mxu0
  %v237 = vadd.f32 %v66, %v236
  %v238 = vpop.f32.mrb[0].mxu0
  %v239 = vpop.f32.mrb[0].mxu0
  %v240 = vadd.f32 %v66, %v239
  %v241 = vpop.f32.mrb[0].mxu0
  %242 = vmatprep.mubr.bf16.mxu0 0
  %243 = vmatmul.mubr.bf16.gmra.mrb[0].mxu0 %v112
  %v244 = vpop.f32.mrb[0].mxu0
  %v245 = vadd.f32 %v66, %v244
  %v246 = vpop.f32.mrb[0].mxu0
  %v247 = vpop.f32.mrb[0].mxu0
  %v248 = vpop.f32.mrb[0].mxu0
  %249 = vdwg.mxu0
  %v250 = vmax.f32 %v149, 0.0
  %v251 = vmax.f32 %v152, 0.0
  %v252 = vmax.f32 %v157, 0.0
  %v253 = vmax.f32 %v160, 0.0
  %v254 = vmax.f32 %v165, 0.0
  %v255 = vmax.f32 %v168, 0.0
  %v256 = vmax.f32 %v173, 0.0
  %v257 = vmax.f32 %v176, 0.0
  %v258 = vmax.f32 %v181, 0.0
  %v259 = vmax.f32 %v184, 0.0
  %v260 = vmax.f32 %v189, 0.0
  %v261 = vmax.f32 %v192, 0.0
  %v262 = vmax.f32 %v197, 0.0
  %v263 = vmax.f32 %v200, 0.0
  %v264 = vmax.f32 %v205, 0.0
  %v265 = vmax.f32 %v208, 0.0
  %v266 = vmax.f32 %v213, 0.0
  %v267 = vmax.f32 %v216, 0.0
  %v268 = vmax.f32 %v221, 0.0
  %v269 = vmax.f32 %v224, 0.0
  %v270 = vmax.f32 %v229, 0.0
  %v271 = vmax.f32 %v232, 0.0
  %v272 = vmax.f32 %v237, 0.0
  %v273 = vmax.f32 %v240, 0.0
  %v274 = vmax.f32 %v245, 0.0
  %v275 = vpack.c.bf16 %v251, %v250
  %v276 = vpack.c.bf16 %v253, %v252
  %v277 = vpack.c.bf16 %v255, %v254
  %v278 = vpack.c.bf16 %v257, %v256
  %v279 = vpack.c.bf16 %v259, %v258
  %v280 = vpack.c.bf16 %v261, %v260
  %v281 = vpack.c.bf16 %v263, %v262
  %v282 = vpack.c.bf16 %v265, %v264
  %v283 = vpack.c.bf16 %v267, %v266
  %v284 = vpack.c.bf16 %v269, %v268
  %v285 = vpack.c.bf16 %v271, %v270
  %v286 = vpack.c.bf16 %v273, %v272
  %v287 = vpack.c.bf16 %v274, %v274
  %v288 = vld [vmem:[%s3] sm:$0xf]
  %v289 = vld [vmem:[%s3 + $0x4] sm:$0xf]
  %v290 = vld [vmem:[%s3 + $0x8] sm:$0xf]
  %v291 = vld [vmem:[%s3 + $0xc] sm:$0xf]
  %v292 = vld [vmem:[%s3 + $0x10] sm:$0xf]
  %v293 = vld [vmem:[%s3 + $0x14] sm:$0xf]
  %v294 = vld [vmem:[%s3 + $0x18] sm:$0xf]
  %v295 = vld [vmem:[%s3 + $0x1c] sm:$0xf]
  %v296 = vld [vmem:[%s3 + $0x20] sm:$0xf]
  %v297 = vld [vmem:[%s3 + $0x24] sm:$0xf]
  %v298 = vld [vmem:[%s3 + $0x28] sm:$0xf]
  %v299 = vld [vmem:[%s3 + $0x2c] sm:$0xf]
  %v300 = vld [vmem:[%s3 + $0x30] sm:$0xf]
  %v301 = vld [vmem:[%s3 + $0x34] sm:$0xf]
  %v302 = vld [vmem:[%s3 + $0x38] sm:$0xf]
  %v303 = vld [vmem:[%s3 + $0x3c] sm:$0xf]
  %v304 = vld [vmem:[%s4] sm:$0x1]
  %v306 = vlaneseq
  %v307 = vshrl.u32 %v306, 7
  %v308 = vsub.s32 0, %v307
  %v309 = vrot.slane %v304, %v308
  %v327 = vunpack.c.l.b16 %v288
  %v328 = vunpack.c.l.b16 %v289
  %v329 = vunpack.c.l.b16 %v290
  %v330 = vunpack.c.l.b16 %v291
  %v331 = vunpack.c.l.b16 %v292
  %v332 = vunpack.c.l.b16 %v293
  %v333 = vunpack.c.l.b16 %v294
  %v334 = vunpack.c.l.b16 %v295
  %v335 = vunpack.c.l.b16 %v296
  %v336 = vunpack.c.l.b16 %v297
  %v337 = vunpack.c.l.b16 %v298
  %v338 = vunpack.c.l.b16 %v299
  %v339 = vunpack.c.l.b16 %v300
  %v340 = vunpack.c.l.b16 %v301
  %v341 = vunpack.c.l.b16 %v302
  %v342 = vunpack.c.l.b16 %v303
  %v343 = vpack.c.b16 %v328, %v327
  %v344 = vpack.c.b16 %v330, %v329
  %v345 = vpack.c.b16 %v332, %v331
  %v346 = vpack.c.b16 %v334, %v333
  %v347 = vpack.c.b16 %v336, %v335
  %v348 = vpack.c.b16 %v338, %v337
  %v349 = vpack.c.b16 %v340, %v339
  %v350 = vpack.c.b16 %v342, %v341
  %359 = vmatprep.subr.bf16.mxu0 0
  %360 = vmatpush1.bf16.msra.mxu0 %v343
  %361 = vmatprep.subr.bf16.mxu0 0
  %362 = vmatpush1.bf16.msra.mxu0 %v344
  %363 = vmatprep.subr.bf16.mxu0 0
  %364 = vmatpush1.bf16.msra.mxu0 %v345
  %365 = vmatprep.subr.bf16.mxu0 0
  %366 = vmatpush1.bf16.msra.mxu0 %v346
  %367 = vmatprep.subr.bf16.mxu0 0
  %368 = vmatpush1.bf16.msra.mxu0 %v347
  %369 = vmatprep.subr.bf16.mxu0 0
  %370 = vmatpush1.bf16.msra.mxu0 %v348
  %371 = vmatprep.subr.bf16.mxu0 0
  %372 = vmatpush1.bf16.msra.mxu0 %v349
  %373 = vmatprep.subr.bf16.mxu0 0
  %374 = vmatpush1.bf16.msra.mxu0 %v350
  %375 = vmatprep.subr.bf16.mxu0 0
  %376 = vmatpush1.bf16.msra.mxu0 0
  %377 = vmatprep.subr.bf16.mxu0 0
  %378 = vmatpush1.bf16.msra.mxu0 0
  %379 = vmatprep.subr.bf16.mxu0 0
  %380 = vmatpush1.bf16.msra.mxu0 0
  %381 = vmatprep.subr.bf16.mxu0 0
  %382 = vmatpush1.bf16.msra.mxu0 0
  %383 = vmatprep.subr.bf16.mxu0 0
  %384 = vmatpush1.bf16.msra.mxu0 0
  %385 = vmatprep.subr.bf16.mxu0 0
  %386 = vmatpush1.bf16.msra.mxu0 0
  %387 = vmatprep.subr.bf16.mxu0 0
  %388 = vmatpush1.bf16.msra.mxu0 0
  %389 = vmatprep.subr.bf16.mxu0 0
  %390 = vmatpush1.bf16.msra.mxu0 0
  %391 = vmatprep.mubr.bf16.mxu0 0
  %392 = vmatmul.mubr.bf16.gmra.mrb[0].mxu0 %v275
  %v393 = vpop.f32.mrb[0].mxu0
  %v394 = vadd.f32 %v309, %v393
  %v395 = vpop.f32.mrb[0].mxu0
  %v396 = vpop.f32.mrb[0].mxu0
  %v397 = vadd.f32 %v309, %v396
  %v398 = vpop.f32.mrb[0].mxu0
  %399 = vmatprep.mubr.bf16.mxu0 0
  %400 = vmatmul.mubr.bf16.gmra.mrb[0].mxu0 %v276
  %v401 = vpop.f32.mrb[0].mxu0
  %v402 = vadd.f32 %v309, %v401
  %v403 = vpop.f32.mrb[0].mxu0
  %v404 = vpop.f32.mrb[0].mxu0
  %v405 = vadd.f32 %v309, %v404
  %v406 = vpop.f32.mrb[0].mxu0
  %407 = vmatprep.mubr.bf16.mxu0 0
  %408 = vmatmul.mubr.bf16.gmra.mrb[0].mxu0 %v277
  %v409 = vpop.f32.mrb[0].mxu0
  %v410 = vadd.f32 %v309, %v409
  %v411 = vpop.f32.mrb[0].mxu0
  %v412 = vpop.f32.mrb[0].mxu0
  %v413 = vadd.f32 %v309, %v412
  %v414 = vpop.f32.mrb[0].mxu0
  %415 = vmatprep.mubr.bf16.mxu0 0
  %416 = vmatmul.mubr.bf16.gmra.mrb[0].mxu0 %v278
  %v417 = vpop.f32.mrb[0].mxu0
  %v418 = vadd.f32 %v309, %v417
  %v419 = vpop.f32.mrb[0].mxu0
  %v420 = vpop.f32.mrb[0].mxu0
  %v421 = vadd.f32 %v309, %v420
  %v422 = vpop.f32.mrb[0].mxu0
  %423 = vmatprep.mubr.bf16.mxu0 0
  %424 = vmatmul.mubr.bf16.gmra.mrb[0].mxu0 %v279
  %v425 = vpop.f32.mrb[0].mxu0
  %v426 = vadd.f32 %v309, %v425
  %v427 = vpop.f32.mrb[0].mxu0
  %v428 = vpop.f32.mrb[0].mxu0
  %v429 = vadd.f32 %v309, %v428
  %v430 = vpop.f32.mrb[0].mxu0
  %431 = vmatprep.mubr.bf16.mxu0 0
  %432 = vmatmul.mubr.bf16.gmra.mrb[0].mxu0 %v280
  %v433 = vpop.f32.mrb[0].mxu0
  %v434 = vadd.f32 %v309, %v433
  %v435 = vpop.f32.mrb[0].mxu0
  %v436 = vpop.f32.mrb[0].mxu0
  %v437 = vadd.f32 %v309, %v436
  %v438 = vpop.f32.mrb[0].mxu0
  %439 = vmatprep.mubr.bf16.mxu0 0
  %440 = vmatmul.mubr.bf16.gmra.mrb[0].mxu0 %v281
  %v441 = vpop.f32.mrb[0].mxu0
  %v442 = vadd.f32 %v309, %v441
  %v443 = vpop.f32.mrb[0].mxu0
  %v444 = vpop.f32.mrb[0].mxu0
  %v445 = vadd.f32 %v309, %v444
  %v446 = vpop.f32.mrb[0].mxu0
  %447 = vmatprep.mubr.bf16.mxu0 0
  %448 = vmatmul.mubr.bf16.gmra.mrb[0].mxu0 %v282
  %v449 = vpop.f32.mrb[0].mxu0
  %v450 = vadd.f32 %v309, %v449
  %v451 = vpop.f32.mrb[0].mxu0
  %v452 = vpop.f32.mrb[0].mxu0
  %v453 = vadd.f32 %v309, %v452
  %v454 = vpop.f32.mrb[0].mxu0
  %455 = vmatprep.mubr.bf16.mxu0 0
  %456 = vmatmul.mubr.bf16.gmra.mrb[0].mxu0 %v283
  %v457 = vpop.f32.mrb[0].mxu0
  %v458 = vadd.f32 %v309, %v457
  %v459 = vpop.f32.mrb[0].mxu0
  %v460 = vpop.f32.mrb[0].mxu0
  %v461 = vadd.f32 %v309, %v460
  %v462 = vpop.f32.mrb[0].mxu0
  %463 = vmatprep.mubr.bf16.mxu0 0
  %464 = vmatmul.mubr.bf16.gmra.mrb[0].mxu0 %v284
  %v465 = vpop.f32.mrb[0].mxu0
  %v466 = vadd.f32 %v309, %v465
  %v467 = vpop.f32.mrb[0].mxu0
  %v468 = vpop.f32.mrb[0].mxu0
  %v469 = vadd.f32 %v309, %v468
  %v470 = vpop.f32.mrb[0].mxu0
  %471 = vmatprep.mubr.bf16.mxu0 0
  %472 = vmatmul.mubr.bf16.gmra.mrb[0].mxu0 %v285
  %v473 = vpop.f32.mrb[0].mxu0
  %v474 = vadd.f32 %v309, %v473
  %v475 = vpop.f32.mrb[0].mxu0
  %v476 = vpop.f32.mrb[0].mxu0
  %v477 = vadd.f32 %v309, %v476
  %v478 = vpop.f32.mrb[0].mxu0
  %479 = vmatprep.mubr.bf16.mxu0 0
  %480 = vmatmul.mubr.bf16.gmra.mrb[0].mxu0 %v286
  %v481 = vpop.f32.mrb[0].mxu0
  %v482 = vadd.f32 %v309, %v481
  %v483 = vpop.f32.mrb[0].mxu0
  %v484 = vpop.f32.mrb[0].mxu0
  %v485 = vadd.f32 %v309, %v484
  %v486 = vpop.f32.mrb[0].mxu0
  %487 = vmatprep.mubr.bf16.mxu0 0
  %488 = vmatmul.mubr.bf16.gmra.mrb[0].mxu0 %v287
  %v489 = vpop.f32.mrb[0].mxu0
  %v490 = vadd.f32 %v309, %v489
  %v491 = vpop.f32.mrb[0].mxu0
  %v492 = vpop.f32.mrb[0].mxu0
  %v493 = vpop.f32.mrb[0].mxu0
  %494 = vdwg.mxu0
  %495 = vmax.xlane.f32.xlu0 %v394
  %v496 = vpop.xlane.xlu0 %495
  %497 = vmax.xlane.f32.xlu0 %v397
  %v498 = vpop.xlane.xlu0 %497
  %499 = vmax.xlane.f32.xlu0 %v402
  %v500 = vpop.xlane.xlu0 %499
  %501 = vmax.xlane.f32.xlu0 %v405
  %v502 = vpop.xlane.xlu0 %501
  %503 = vmax.xlane.f32.xlu0 %v410
  %v504 = vpop.xlane.xlu0 %503
  %505 = vmax.xlane.f32.xlu0 %v413
  %v506 = vpop.xlane.xlu0 %505
  %507 = vmax.xlane.f32.xlu0 %v418
  %v508 = vpop.xlane.xlu0 %507
  %509 = vmax.xlane.f32.xlu0 %v421
  %v510 = vpop.xlane.xlu0 %509
  %511 = vmax.xlane.f32.xlu0 %v426
  %v512 = vpop.xlane.xlu0 %511
  %513 = vmax.xlane.f32.xlu0 %v429
  %v514 = vpop.xlane.xlu0 %513
  %515 = vmax.xlane.f32.xlu0 %v434
  %v516 = vpop.xlane.xlu0 %515
  %517 = vmax.xlane.f32.xlu0 %v437
  %v518 = vpop.xlane.xlu0 %517
  %519 = vmax.xlane.f32.xlu0 %v442
  %v520 = vpop.xlane.xlu0 %519
  %521 = vmax.xlane.f32.xlu0 %v445
  %v522 = vpop.xlane.xlu0 %521
  %523 = vmax.xlane.f32.xlu0 %v450
  %v524 = vpop.xlane.xlu0 %523
  %525 = vmax.xlane.f32.xlu0 %v453
  %v526 = vpop.xlane.xlu0 %525
  %527 = vmax.xlane.f32.xlu0 %v458
  %v528 = vpop.xlane.xlu0 %527
  %529 = vmax.xlane.f32.xlu0 %v461
  %v530 = vpop.xlane.xlu0 %529
  %531 = vmax.xlane.f32.xlu0 %v466
  %v532 = vpop.xlane.xlu0 %531
  %533 = vmax.xlane.f32.xlu0 %v469
  %v534 = vpop.xlane.xlu0 %533
  %535 = vmax.xlane.f32.xlu0 %v474
  %v536 = vpop.xlane.xlu0 %535
  %537 = vmax.xlane.f32.xlu0 %v477
  %v538 = vpop.xlane.xlu0 %537
  %539 = vmax.xlane.f32.xlu0 %v482
  %v540 = vpop.xlane.xlu0 %539
  %541 = vmax.xlane.f32.xlu0 %v485
  %v542 = vpop.xlane.xlu0 %541
  %543 = vmax.xlane.f32.xlu0 %v490
  %v544 = vpop.xlane.xlu0 %543
  %v545 = vsub.f32 %v394, %v496
  %v546 = vsub.f32 %v397, %v498
  %v547 = vsub.f32 %v402, %v500
  %v548 = vsub.f32 %v405, %v502
  %v549 = vsub.f32 %v410, %v504
  %v550 = vsub.f32 %v413, %v506
  %v551 = vsub.f32 %v418, %v508
  %v552 = vsub.f32 %v421, %v510
  %v553 = vsub.f32 %v426, %v512
  %v554 = vsub.f32 %v429, %v514
  %v555 = vsub.f32 %v434, %v516
  %v556 = vsub.f32 %v437, %v518
  %v557 = vsub.f32 %v442, %v520
  %v558 = vsub.f32 %v445, %v522
  %v559 = vsub.f32 %v450, %v524
  %v560 = vsub.f32 %v453, %v526
  %v561 = vsub.f32 %v458, %v528
  %v562 = vsub.f32 %v461, %v530
  %v563 = vsub.f32 %v466, %v532
  %v564 = vsub.f32 %v469, %v534
  %v565 = vsub.f32 %v474, %v536
  %v566 = vsub.f32 %v477, %v538
  %v567 = vsub.f32 %v482, %v540
  %v568 = vsub.f32 %v485, %v542
  %v569 = vsub.f32 %v490, %v544
  %v570 = vmul.f32 %v545, 1.442695
  %v571 = vpow.pop %v570
  %v572 = vmul.f32 %v546, 1.442695
  %v573 = vpow.pop %v572
  %v574 = vmul.f32 %v547, 1.442695
  %v575 = vpow.pop %v574
  %v576 = vmul.f32 %v548, 1.442695
  %v577 = vpow.pop %v576
  %v578 = vmul.f32 %v549, 1.442695
  %v579 = vpow.pop %v578
  %v580 = vmul.f32 %v550, 1.442695
  %v581 = vpow.pop %v580
  %v582 = vmul.f32 %v551, 1.442695
  %v583 = vpow.pop %v582
  %v584 = vmul.f32 %v552, 1.442695
  %v585 = vpow.pop %v584
  %v586 = vmul.f32 %v553, 1.442695
  %v587 = vpow.pop %v586
  %v588 = vmul.f32 %v554, 1.442695
  %v589 = vpow.pop %v588
  %v590 = vmul.f32 %v555, 1.442695
  %v591 = vpow.pop %v590
  %v592 = vmul.f32 %v556, 1.442695
  %v593 = vpow.pop %v592
  %v594 = vmul.f32 %v557, 1.442695
  %v595 = vpow.pop %v594
  %v596 = vmul.f32 %v558, 1.442695
  %v597 = vpow.pop %v596
  %v598 = vmul.f32 %v559, 1.442695
  %v599 = vpow.pop %v598
  %v600 = vmul.f32 %v560, 1.442695
  %v601 = vpow.pop %v600
  %v602 = vmul.f32 %v561, 1.442695
  %v603 = vpow.pop %v602
  %v604 = vmul.f32 %v562, 1.442695
  %v605 = vpow.pop %v604
  %v606 = vmul.f32 %v563, 1.442695
  %v607 = vpow.pop %v606
  %v608 = vmul.f32 %v564, 1.442695
  %v609 = vpow.pop %v608
  %v610 = vmul.f32 %v565, 1.442695
  %v611 = vpow.pop %v610
  %v612 = vmul.f32 %v566, 1.442695
  %v613 = vpow.pop %v612
  %v614 = vmul.f32 %v567, 1.442695
  %v615 = vpow.pop %v614
  %v616 = vmul.f32 %v568, 1.442695
  %v617 = vpow.pop %v616
  %v618 = vmul.f32 %v569, 1.442695
  %v619 = vpow.pop %v618
  %620 = vadd.xlane.f32.xlu0 %v571
  %v621 = vpop.xlane.xlu0 %620
  %622 = vadd.xlane.f32.xlu0 %v573
  %v623 = vpop.xlane.xlu0 %622
  %624 = vadd.xlane.f32.xlu0 %v575
  %v625 = vpop.xlane.xlu0 %624
  %626 = vadd.xlane.f32.xlu0 %v577
  %v627 = vpop.xlane.xlu0 %626
  %628 = vadd.xlane.f32.xlu0 %v579
  %v629 = vpop.xlane.xlu0 %628
  %630 = vadd.xlane.f32.xlu0 %v581
  %v631 = vpop.xlane.xlu0 %630
  %632 = vadd.xlane.f32.xlu0 %v583
  %v633 = vpop.xlane.xlu0 %632
  %634 = vadd.xlane.f32.xlu0 %v585
  %v635 = vpop.xlane.xlu0 %634
  %636 = vadd.xlane.f32.xlu0 %v587
  %v637 = vpop.xlane.xlu0 %636
  %638 = vadd.xlane.f32.xlu0 %v589
  %v639 = vpop.xlane.xlu0 %638
  %640 = vadd.xlane.f32.xlu0 %v591
  %v641 = vpop.xlane.xlu0 %640
  %642 = vadd.xlane.f32.xlu0 %v593
  %v643 = vpop.xlane.xlu0 %642
  %644 = vadd.xlane.f32.xlu0 %v595
  %v645 = vpop.xlane.xlu0 %644
  %646 = vadd.xlane.f32.xlu0 %v597
  %v647 = vpop.xlane.xlu0 %646
  %648 = vadd.xlane.f32.xlu0 %v599
  %v649 = vpop.xlane.xlu0 %648
  %650 = vadd.xlane.f32.xlu0 %v601
  %v651 = vpop.xlane.xlu0 %650
  %652 = vadd.xlane.f32.xlu0 %v603
  %v653 = vpop.xlane.xlu0 %652
  %654 = vadd.xlane.f32.xlu0 %v605
  %v655 = vpop.xlane.xlu0 %654
  %656 = vadd.xlane.f32.xlu0 %v607
  %v657 = vpop.xlane.xlu0 %656
  %658 = vadd.xlane.f32.xlu0 %v609
  %v659 = vpop.xlane.xlu0 %658
  %660 = vadd.xlane.f32.xlu0 %v611
  %v661 = vpop.xlane.xlu0 %660
  %662 = vadd.xlane.f32.xlu0 %v613
  %v663 = vpop.xlane.xlu0 %662
  %664 = vadd.xlane.f32.xlu0 %v615
  %v665 = vpop.xlane.xlu0 %664
  %666 = vadd.xlane.f32.xlu0 %v617
  %v667 = vpop.xlane.xlu0 %666
  %668 = vadd.xlane.f32.xlu0 %v619
  %v669 = vpop.xlane.xlu0 %668
  %v670 = vrcp.pop %v621
  %v671 = vmul.f32 %v571, %v670
  %v672 = vrcp.pop %v623
  %v673 = vmul.f32 %v573, %v672
  %v674 = vrcp.pop %v625
  %v675 = vmul.f32 %v575, %v674
  %v676 = vrcp.pop %v627
  %v677 = vmul.f32 %v577, %v676
  %v678 = vrcp.pop %v629
  %v679 = vmul.f32 %v579, %v678
  %v680 = vrcp.pop %v631
  %v681 = vmul.f32 %v581, %v680
  %v682 = vrcp.pop %v633
  %v683 = vmul.f32 %v583, %v682
  %v684 = vrcp.pop %v635
  %v685 = vmul.f32 %v585, %v684
  %v686 = vrcp.pop %v637
  %v687 = vmul.f32 %v587, %v686
  %v688 = vrcp.pop %v639
  %v689 = vmul.f32 %v589, %v688
  %v690 = vrcp.pop %v641
  %v691 = vmul.f32 %v591, %v690
  %v692 = vrcp.pop %v643
  %v693 = vmul.f32 %v593, %v692
  %v694 = vrcp.pop %v645
  %v695 = vmul.f32 %v595, %v694
  %v696 = vrcp.pop %v647
  %v697 = vmul.f32 %v597, %v696
  %v698 = vrcp.pop %v649
  %v699 = vmul.f32 %v599, %v698
  %v700 = vrcp.pop %v651
  %v701 = vmul.f32 %v601, %v700
  %v702 = vrcp.pop %v653
  %v703 = vmul.f32 %v603, %v702
  %v704 = vrcp.pop %v655
  %v705 = vmul.f32 %v605, %v704
  %v706 = vrcp.pop %v657
  %v707 = vmul.f32 %v607, %v706
  %v708 = vrcp.pop %v659
  %v709 = vmul.f32 %v609, %v708
  %v710 = vrcp.pop %v661
  %v711 = vmul.f32 %v611, %v710
  %v712 = vrcp.pop %v663
  %v713 = vmul.f32 %v613, %v712
  %v714 = vrcp.pop %v665
  %v715 = vmul.f32 %v615, %v714
  %v716 = vrcp.pop %v667
  %v717 = vmul.f32 %v617, %v716
  %v718 = vrcp.pop %v669
  %v719 = vmul.f32 %v619, %v718
  %720 = vst [vmem:[%s5] sm:$0xff] %v671
  %721 = vst [vmem:[%s5 + $0x8] sm:$0xff] %v673
  %722 = vst [vmem:[%s5 + $0x10] sm:$0xff] %v675
  %723 = vst [vmem:[%s5 + $0x18] sm:$0xff] %v677
  %724 = vst [vmem:[%s5 + $0x20] sm:$0xff] %v679
  %725 = vst [vmem:[%s5 + $0x28] sm:$0xff] %v681
  %726 = vst [vmem:[%s5 + $0x30] sm:$0xff] %v683
  %727 = vst [vmem:[%s5 + $0x38] sm:$0xff] %v685
  %728 = vst [vmem:[%s5 + $0x40] sm:$0xff] %v687
  %729 = vst [vmem:[%s5 + $0x48] sm:$0xff] %v689
  %730 = vst [vmem:[%s5 + $0x50] sm:$0xff] %v691
  %731 = vst [vmem:[%s5 + $0x58] sm:$0xff] %v693
  %732 = vst [vmem:[%s5 + $0x60] sm:$0xff] %v695
  %733 = vst [vmem:[%s5 + $0x68] sm:$0xff] %v697
  %734 = vst [vmem:[%s5 + $0x70] sm:$0xff] %v699
  %735 = vst [vmem:[%s5 + $0x78] sm:$0xff] %v701
  %736 = vst [vmem:[%s5 + $0x80] sm:$0xff] %v703
  %737 = vst [vmem:[%s5 + $0x88] sm:$0xff] %v705
  %738 = vst [vmem:[%s5 + $0x90] sm:$0xff] %v707
  %739 = vst [vmem:[%s5 + $0x98] sm:$0xff] %v709
  %740 = vst [vmem:[%s5 + $0xa0] sm:$0xff] %v711
  %741 = vst [vmem:[%s5 + $0xa8] sm:$0xff] %v713
  %742 = vst [vmem:[%s5 + $0xb0] sm:$0xff] %v715
  %743 = vst [vmem:[%s5 + $0xb8] sm:$0xff] %v717
  %744 = vst [vmem:[%s5 + $0xc0] sm:$0xff] %v719
  // Predicated region
  $region22: #{_forward.1} parent=0 // pred_check
    _
  $region23: #{_forward.1} parent=0 // pred_check_branch
    %746 = sbr.rel (0) target = $region25
  $region24: #{_forward.1} parent=0 // pred_region
    _
  $region25: #{_forward.1} parent=0 // pred_fallthru
    _
  // Predicated region
  $region26: #{_forward.1} parent=0 // pred_check
    _
  $region27: #{_forward.1} parent=0 // pred_check_branch
    %748 = sbr.rel (0) target = $region29
  $region28: #{_forward.1} parent=0 // pred_region
    _
  $region29: #{_forward.1} parent=0 // pred_fallthru
    _

</llo_original>
